<compile_context>
chip_gen: v5e
topology: v5e:2x2
jax: 0.10.0
libtpu: 0.0.40
codegen_flags: <defaults>
</compile_context>

<pallas_src>
import math

import jax
import jax.numpy as jnp
from jax import lax
from jax.experimental import pallas as pl
from jax.experimental.pallas import tpu as pltpu


_MAX_VOCAB_TILE = 2048      # vocab lanes per step in the general path (multiple of 128)
_MAX_PACKED_LANES = 1024    # max packed-row width; bigger lcm's fall back to general path


def _budgets():
    """(per-step output+input byte budget, vmem_limit_bytes), generation-aware."""
    cap = None
    try:
        cap = getattr(pltpu.get_tpu_info(), "vmem_capacity_bytes", None)
    except Exception:
        cap = None
    if cap is None:
        cap = 64 * 1024 * 1024                       # conservative (v7x per-TC VMEM)
    if cap >= 96 * 1024 * 1024:                      # v5e / v6e: 128 MiB VMEM
        return 16 * 1024 * 1024, 56 * 1024 * 1024
    return 8 * 1024 * 1024, 28 * 1024 * 1024         # v7x: 64 MiB VMEM per TensorCore


def _round_up(x: int, m: int) -> int:
    return (x + m - 1) // m * m


def _pick_row_tile(n_rows: int, bytes_per_row: int, budget: int) -> int:
    """Largest multiple-of-8 row tile fitting the byte budget (or full extent)."""
    rows = max(8, (budget // max(bytes_per_row, 1)) // 8 * 8)
    return n_rows if rows >= n_rows else rows


def _split_rows_for_megacore(row_tile: int, n_rows: int, other_grid_extent: int,
                             out_bytes: int) -> int:
    """v7x has 2 TensorCores: make sure at least one parallel axis has >= 2 blocks."""
    if other_grid_extent >= 2 or pl.cdiv(n_rows, row_tile) >= 2:
        return row_tile
    if n_rows >= 16 and out_bytes >= (1 << 20):
        return min(row_tile, _round_up((n_rows + 1) // 2, 8))
    return row_tile


# ---------------------------------------------------------------------------
# General path: 2-D grid over (row tiles, vocab tiles).
# ---------------------------------------------------------------------------
def _one_hot_kernel(tok_ref, out_ref):
    rows, tv = out_ref.shape
    # Grid-loop-invariant lane iota (hoistable); shift the (rows, 1) token
    # column instead, so per-output-vreg VPU work is just compare + cast.
    col = lax.broadcasted_iota(jnp.int32, (rows, tv), 1)
    t = tok_ref[...] - pl.program_id(1) * tv
    out_ref[...] = (t == col).astype(jnp.float32)


def _general_path(tok_flat: jax.Array, n: int, vocab_size: int) -> jax.Array:
    buf_budget, vmem_limit = _budgets()
    # Lane tile: full extent when it fits (also handles V % 128 != 0 without a
    # dedicated, mostly-masked ragged grid column), else 2048-lane tiles.
    tile_v = vocab_size if vocab_size <= _MAX_VOCAB_TILE else _MAX_VOCAB_TILE
    pad_v = _round_up(tile_v, 128)
    # Budget counts the f32 output tile plus the (row_tile, 1) int32 token
    # block, which pads to 128 lanes in VMEM.
    # TODO(synk): feed tokens lane-dense if profiling ever shows the token DMA exposed.
    row_tile = _pick_row_tile(n, (pad_v + 128) * 4, buf_budget)
    vocab_grid = pl.cdiv(vocab_size, tile_v)
    row_tile = _split_rows_for_megacore(row_tile, n, vocab_grid, 4 * n * vocab_size)
    grid = (pl.cdiv(n, row_tile), vocab_grid)

    return pl.pallas_call(
        _one_hot_kernel,
        out_shape=jax.ShapeDtypeStruct((n, vocab_size), jnp.float32),
        grid=grid,
        in_specs=[pl.BlockSpec((row_tile, 1), lambda i, j: (i, 0))],
        out_specs=pl.BlockSpec((row_tile, tile_v), lambda i, j: (i, j)),
        compiler_params=pltpu.CompilerParams(
            dimension_semantics=("parallel", "parallel"),
            vmem_limit_bytes=vmem_limit,
        ),
        cost_estimate=pl.CostEstimate(
            flops=n * vocab_size,
            transcendentals=0,
            bytes_accessed=4 * n * vocab_size + 4 * n,
        ),
    )(tok_flat.reshape(n, 1))


# ---------------------------------------------------------------------------
# Packed small-vocab path: lcm(128, V)//V tokens per lcm-lane output row.
# ---------------------------------------------------------------------------
def _one_hot_packed_kernel(tok_ref, sel_ref, lanemod_ref, out_ref):
    # rep[r, l] = tok[r, l // V], replicated on the MXU via the constant 0/1
    # selector matrix; exact for small-integer token values.
    t = tok_ref[...].astype(jnp.float32)
    rep = jnp.dot(t, sel_ref[...], preferred_element_type=jnp.float32)
    # Compare against the hoisted (l % V) row. Out-of-range tokens can never
    # equal any value in [0, V), so they yield an all-zero row — same behaviour
    # as the general path.
    out_ref[...] = (rep == lanemod_ref[...]).astype(jnp.float32)


def _packed_path(tok_flat: jax.Array, n: int, vocab_size: int, lanes: int) -> jax.Array:
    buf_budget, vmem_limit = _budgets()
    pack = lanes // vocab_size
    n_groups = n // pack
    # Budget: f32 output tile + int32 token block (pack lanes pad to 128 in VMEM).
    row_tile = _pick_row_tile(n_groups, (lanes + 128) * 4, buf_budget)
    row_tile = _split_rows_for_megacore(row_tile, n_groups, 1, 4 * n * vocab_size)
    grid = (pl.cdiv(n_groups, row_tile),)

    # Tiny constants (DMA'd once: constant index_map => block never changes).
    l_idx = jnp.arange(lanes, dtype=jnp.int32)
    sel = (l_idx[None, :] // vocab_size
           == jnp.arange(pack, dtype=jnp.int32)[:, None]).astype(jnp.float32)
    lane_mod = (l_idx % vocab_size).astype(jnp.float32).reshape(1, lanes)

    out = pl.pallas_call(
        _one_hot_packed_kernel,
        out_shape=jax.ShapeDtypeStruct((n_groups, lanes), jnp.float32),
        grid=grid,
        in_specs=[
            pl.BlockSpec((row_tile, pack), lambda i: (i, 0)),
            pl.BlockSpec((pack, lanes), lambda i: (0, 0)),   # constant selector
            pl.BlockSpec((1, lanes), lambda i: (0, 0)),       # constant (l % V) row
        ],
        out_specs=pl.BlockSpec((row_tile, lanes), lambda i: (i, 0)),
        compiler_params=pltpu.CompilerParams(
            dimension_semantics=("parallel",),
            vmem_limit_bytes=vmem_limit,
        ),
        cost_estimate=pl.CostEstimate(
            flops=n * vocab_size,
            transcendentals=0,
            bytes_accessed=4 * n * vocab_size + 4 * n,
        ),
    )(tok_flat.reshape(n_groups, pack), sel, lane_mod)
    # (n_groups, lanes) -> (n, V): contiguous row-major reshape, no extra HBM copy.
    return out.reshape(n, vocab_size)


# ---------------------------------------------------------------------------
# Public wrapper (LabelEncoder.forward equivalent).
# ---------------------------------------------------------------------------
def label_encoder(tokens: jax.Array, vocab_size: int) -> jax.Array:
    """One-hot encode integer tokens to float32, matching F.one_hot(...).float().

    TODO(synk): F.one_hot raises on out-of-range tokens; here both paths emit an
    all-zero row for them instead (no in-kernel raising mechanism).
    """
    tokens = tokens.astype(jnp.int32)
    orig_shape = tokens.shape
    n = 1
    for d in orig_shape:
        n *= d
    if n == 0:
        return jnp.zeros((*orig_shape, vocab_size), jnp.float32)
    tok_flat = tokens.reshape(n)

    lanes = (128 * vocab_size) // math.gcd(128, vocab_size) if vocab_size > 0 else 0
    use_packed = (
        0 < vocab_size < 128
        and lanes <= _MAX_PACKED_LANES
        and n % (lanes // vocab_size) == 0
    )
    if use_packed:
        out = _packed_path(tok_flat, n, vocab_size, lanes)
    else:
        out = _general_path(tok_flat, n, vocab_size)
    return out.reshape(*orig_shape, vocab_size)


if __name__ == "__main__":
    key = jax.random.PRNGKey(0)
    k0, k1, k2, k3 = jax.random.split(key, 4)

    def check(tokens, vocab):
        out = jax.block_until_ready(label_encoder(tokens, vocab))
        ref = jax.nn.one_hot(tokens, vocab, dtype=jnp.float32)
        assert out.shape == tokens.shape + (vocab,), (out.shape, vocab)
        assert out.dtype == jnp.float32, out.dtype
        assert bool(jnp.all(out == ref)), f"mismatch vs reference one-hot (V={vocab})"

    # Small-vocab packed path (V=32 -> 4 tokens packed per 128-lane row).
    check(jax.random.randint(k0, (2, 128), 0, 32, dtype=jnp.int32), 32)
    # lcm-packed path (V=24 -> 16 tokens packed per 384-lane row).
    check(jax.random.randint(k1, (2, 96), 0, 24, dtype=jnp.int32), 24)
    # General lane-dense path, V a multiple of 128.
    check(jax.random.randint(k2, (2, 8), 0, 256, dtype=jnp.int32), 256)
    # General path with a ragged (non-multiple-of-128) full-extent vocab tile.
    check(jax.random.randint(k3, (2, 8), 0, 1000, dtype=jnp.int32), 1000)

    print("KERNEL_OK")
</pallas_src>

<mosaic_0001>
module attributes {stable_mosaic.version = 11 : i64} {
  func.func @_one_hot_packed_kernel(%arg0: i32, %arg1: memref<64x4xi32, #tpu.memory_space<vmem>>, %arg2: memref<4x128xf32, #tpu.memory_space<vmem>>, %arg3: memref<1x128xf32, #tpu.memory_space<vmem>>, %arg4: memref<64x128xf32, #tpu.memory_space<vmem>>) attributes {dimension_semantics = [#tpu.dimension_semantics<parallel>], iteration_bounds = array<i64: 1>, scalar_prefetch = 0 : i64, scratch_operands = 0 : i64, tpu.core_type = #tpu.core_type<tc>, window_params = [{transform_indices = @transform_0, window_bounds = array<i64: 64, 4>}, {pipeline_mode = #tpu.pipeline_mode<synchronous>, transform_indices = @transform_1, window_bounds = array<i64: 4, 128>}, {pipeline_mode = #tpu.pipeline_mode<synchronous>, transform_indices = @transform_2, window_bounds = array<i64: 1, 128>}, {transform_indices = @transform_3, window_bounds = array<i64: 64, 128>}]} {
    %c0 = arith.constant 0 : index
    %c0_0 = arith.constant 0 : index
    %0 = vector.load %arg1[%c0, %c0_0] : memref<64x4xi32, #tpu.memory_space<vmem>>, vector<64x4xi32>
    %1 = arith.sitofp %0 : vector<64x4xi32> to vector<64x4xf32>
    %c0_1 = arith.constant 0 : index
    %c0_2 = arith.constant 0 : index
    %2 = vector.load %arg2[%c0_1, %c0_2] : memref<4x128xf32, #tpu.memory_space<vmem>>, vector<4x128xf32>
    %cst = arith.constant dense<0.000000e+00> : vector<64x128xf32>
    %3 = tpu.matmul %1, %2, %cst {dimension_numbers = #tpu.dot_dimension_numbers<[1], [0], [0], [1], [0, 0, 1, 1], [], []>} : vector<64x4xf32>, vector<4x128xf32>, vector<64x128xf32> -> vector<64x128xf32>
    %c0_3 = arith.constant 0 : index
    %c0_4 = arith.constant 0 : index
    %4 = vector.load %arg3[%c0_3, %c0_4] : memref<1x128xf32, #tpu.memory_space<vmem>>, vector<1x128xf32>
    %5 = vector.broadcast %4 : vector<1x128xf32> to vector<64x128xf32>
    %6 = arith.cmpf oeq, %3, %5 : vector<64x128xf32>
    %7 = arith.extui %6 : vector<64x128xi1> to vector<64x128xi32>
    %8 = arith.sitofp %7 : vector<64x128xi32> to vector<64x128xf32>
    %c0_5 = arith.constant 0 : index
    %c0_6 = arith.constant 0 : index
    %9 = vector.load %arg4[%c0_5, %c0_6] : memref<64x128xf32, #tpu.memory_space<vmem>>, vector<64x128xf32>
    tpu.vector_store %arg4[%c0_5, %c0_6], %8 {strides = array<i32>} : memref<64x128xf32, #tpu.memory_space<vmem>>, vector<64x128xf32>,
    return
  }
  func.func @transform_0(%arg0: i32) -> (i32, i32) {
    %c0_i32 = arith.constant 0 : i32
    %c0_i32_0 = arith.constant 0 : i32
    return %arg0, %c0_i32 : i32, i32
  }
  func.func @transform_1(%arg0: i32) -> (i32, i32) {
    %c0_i32 = arith.constant 0 : i32
    %c0_i32_0 = arith.constant 0 : i32
    %c0_i32_1 = arith.constant 0 : i32
    return %c0_i32, %c0_i32_0 : i32, i32
  }
  func.func @transform_2(%arg0: i32) -> (i32, i32) {
    %c0_i32 = arith.constant 0 : i32
    %c0_i32_0 = arith.constant 0 : i32
    %c0_i32_1 = arith.constant 0 : i32
    return %c0_i32, %c0_i32_0 : i32, i32
  }
  func.func @transform_3(%arg0: i32) -> (i32, i32) {
    %c0_i32 = arith.constant 0 : i32
    %c0_i32_0 = arith.constant 0 : i32
    return %arg0, %c0_i32 : i32, i32
  }
}

</mosaic_0001>

<llo_original>
// kernel: tpu_custom_call.1
$region0: #{tpu_custom_call.1}
  #allocation0 [shape = 'u32[]', space=smem, size = 0x4, offset = 0x4, fixed_abs, tag = 'smem constant byte address 0x4 - core index']
  #allocation1 [shape = 'u32[72,128]{1,0:T(1,128)}', space=vmem, size = 0x9000, scoped, tag = 'internal scratch']
  %s0 = inlined_call_operand.vmem [shape: s32[64,4], index: 0, kind: input, shape index: {}]
  %s1 = inlined_call_operand.vmem [shape: f32[4,128], index: 1, kind: input, shape index: {}]
  %s2 = inlined_call_operand.vmem [shape: f32[1,128], index: 2, kind: input, shape index: {}]
  %s3 = inlined_call_operand.hbm [shape: f32[64,128], index: 3, kind: output, shape index: {}]
  %s4 = sld [smem:[#allocation0]]
  $region22: #{tpu_custom_call.1} parent=0
    _
  %s6 = ssub.s32 1, %s4
  %s7 = scalar_select 0, %s6, %s4
  $region1: #{tpu_custom_call.1} parent=0
    #allocation2 [shape = 'u8[32768]{0}', space=vmem, size = 0x8000, scoped, tag = 'output window, operand 0, single buffered']
    #allocation3 [shape = 's32[1]{0}', space=sflag, size = 0x4, scoped, tag = 'scoped memory for tpu_custom_call.1']
    %8 = vsyncpa [#allocation3], 0
    // Predicated region
    $region2: #{tpu_custom_call.1} parent=1 // pred_check
      _
    $region3: #{tpu_custom_call.1} parent=1 // pred_check_branch
      %10 = sbr.rel (0) target = $region5
    $region4: #{tpu_custom_call.1} parent=1 // pred_region
      _
    $region5: #{tpu_custom_call.1} parent=1 // pred_fallthru
      _
    // Predicated region
    $region6: #{tpu_custom_call.1} parent=1 // pred_check
      _
    $region7: #{tpu_custom_call.1} parent=1 // pred_check_branch
      %12 = sbr.rel (0) target = $region9
    $region8: #{tpu_custom_call.1} parent=1 // pred_region
      _
    $region9: #{tpu_custom_call.1} parent=1 // pred_fallthru
      _
    // Predicated region
    $region10: #{tpu_custom_call.1} parent=1 // pred_check
      _
    $region11: #{tpu_custom_call.1} parent=1 // pred_check_branch
      %14 = sbr.rel (0) target = $region13
    $region12: #{tpu_custom_call.1} parent=1 // pred_region
      _
    $region13: #{tpu_custom_call.1} parent=1 // pred_fallthru
      _
    %v15 = vld [vmem:[%s0] sm:$0xff]
    %v16 = vld [vmem:[%s0 + $0x8] sm:$0xff]
    %v17 = vld [vmem:[%s0 + $0x10] sm:$0xff]
    %v18 = vld [vmem:[%s0 + $0x18] sm:$0xff]
    %v19 = vld [vmem:[%s0 + $0x20] sm:$0xff]
    %v20 = vld [vmem:[%s0 + $0x28] sm:$0xff]
    %v21 = vld [vmem:[%s0 + $0x30] sm:$0xff]
    %v22 = vld [vmem:[%s0 + $0x38] sm:$0xff]
    %v23 = vcvt.s32.f32 %v15
    %v24 = vcvt.s32.f32 %v16
    %v25 = vcvt.s32.f32 %v17
    %v26 = vcvt.s32.f32 %v18
    %v27 = vcvt.s32.f32 %v19
    %v28 = vcvt.s32.f32 %v20
    %v29 = vcvt.s32.f32 %v21
    %v30 = vcvt.s32.f32 %v22
    %v31 = vld [vmem:[%s1] sm:$0xf]
    %vm32 = vcmask 31744
    %v34 = vsel %vm32, %v23, 0
    %v37 = vsel %vm32, %v24, 0
    %v40 = vsel %vm32, %v25, 0
    %v43 = vsel %vm32, %v26, 0
    %v46 = vsel %vm32, %v27, 0
    %v49 = vsel %vm32, %v28, 0
    %v52 = vsel %vm32, %v29, 0
    %v55 = vsel %vm32, %v30, 0
    %vm57 = vcmask 1043456
    %v59 = vsel %vm57, %v31, 0
    %61 = vmatpush.msra.mxu0 0.0
    %62 = vmatpush.msra.mxu0 0.0
    %63 = vmatpush.msra.mxu0 0.0
    %64 = vmatpush.msra.mxu0 0.0
    %65 = vmatpush.msra.mxu0 0.0
    %66 = vmatpush.msra.mxu0 0.0
    %67 = vmatpush.msra.mxu0 0.0
    %68 = vmatpush.msra.mxu0 0.0
    %69 = vmatpush.msra.mxu0 0.0
    %70 = vmatpush.msra.mxu0 0.0
    %71 = vmatpush.msra.mxu0 0.0
    %72 = vmatpush.msra.mxu0 0.0
    %73 = vmatpush.msra.mxu0 0.0
    %74 = vmatpush.msra.mxu0 0.0
    %75 = vmatpush.msra.mxu0 0.0
    %76 = vmatpush.msra.mxu0 %v59
    %77 = vmatmul.f32.gmra.mxu0 %v34
    %v78 = vpop.f32.mrf.mxu0
    %v79 = vadd.f32 0.0, %v78
    %80 = vmatmul.f32.gmra.mxu0 %v37
    %v81 = vpop.f32.mrf.mxu0
    %v82 = vadd.f32 0.0, %v81
    %83 = vmatmul.f32.gmra.mxu0 %v40
    %v84 = vpop.f32.mrf.mxu0
    %v85 = vadd.f32 0.0, %v84
    %86 = vmatmul.f32.gmra.mxu0 %v43
    %v87 = vpop.f32.mrf.mxu0
    %v88 = vadd.f32 0.0, %v87
    %89 = vmatmul.f32.gmra.mxu0 %v46
    %v90 = vpop.f32.mrf.mxu0
    %v91 = vadd.f32 0.0, %v90
    %92 = vmatmul.f32.gmra.mxu0 %v49
    %v93 = vpop.f32.mrf.mxu0
    %v94 = vadd.f32 0.0, %v93
    %95 = vmatmul.f32.gmra.mxu0 %v52
    %v96 = vpop.f32.mrf.mxu0
    %v97 = vadd.f32 0.0, %v96
    %98 = vmatmul.f32.gmra.mxu0 %v55
    %v99 = vpop.f32.mrf.mxu0
    %v100 = vadd.f32 0.0, %v99
    %101 = vdwg.mxu0
    %v102 = vld [vmem:[%s2] sm:$0x1]
    %v104 = vperm.slane %v102, 0
    %vm106 = vcmp.eq.f32.partialorder %v79, %v104
    %vm107 = vcmp.eq.f32.partialorder %v82, %v104
    %vm108 = vcmp.eq.f32.partialorder %v85, %v104
    %vm109 = vcmp.eq.f32.partialorder %v88, %v104
    %vm110 = vcmp.eq.f32.partialorder %v91, %v104
    %vm111 = vcmp.eq.f32.partialorder %v94, %v104
    %vm112 = vcmp.eq.f32.partialorder %v97, %v104
    %vm113 = vcmp.eq.f32.partialorder %v100, %v104
    %v114 = vsel %vm106, 1, 0
    %v115 = vsel %vm107, 1, 0
    %v116 = vsel %vm108, 1, 0
    %v117 = vsel %vm109, 1, 0
    %v118 = vsel %vm110, 1, 0
    %v119 = vsel %vm111, 1, 0
    %v120 = vsel %vm112, 1, 0
    %v121 = vsel %vm113, 1, 0
    %v122 = vcvt.s32.f32 %v114
    %v123 = vcvt.s32.f32 %v115
    %v124 = vcvt.s32.f32 %v116
    %v125 = vcvt.s32.f32 %v117
    %v126 = vcvt.s32.f32 %v118
    %v127 = vcvt.s32.f32 %v119
    %v128 = vcvt.s32.f32 %v120
    %v129 = vcvt.s32.f32 %v121
    %130 = vst [vmem:[#allocation2] sm:$0xff] %v122
    %131 = vst [vmem:[#allocation2 + $0x8] sm:$0xff] %v123
    %132 = vst [vmem:[#allocation2 + $0x10] sm:$0xff] %v124
    %133 = vst [vmem:[#allocation2 + $0x18] sm:$0xff] %v125
    %134 = vst [vmem:[#allocation2 + $0x20] sm:$0xff] %v126
    %135 = vst [vmem:[#allocation2 + $0x28] sm:$0xff] %v127
    %136 = vst [vmem:[#allocation2 + $0x30] sm:$0xff] %v128
    %137 = vst [vmem:[#allocation2 + $0x38] sm:$0xff] %v129
    // Predicated region
    $region14: #{tpu_custom_call.1} parent=1 // pred_check
      _
    $region15: #{tpu_custom_call.1} parent=1 // pred_check_branch
      %139 = sbr.rel (0) target = $region17
    $region16: #{tpu_custom_call.1} parent=1 // pred_region
      %141 = vsyncadd [#allocation3], 0
      %s142 = sshll.u32 [#allocation2], 4
      %s143 = int_to_ptr.vmem [resolvable:$true] %s142
      %s144 = sshll.u32 %s3, 4
      %s145 = int_to_ptr.hbm [resolvable:$true] %s144
      %150 = dma.vmem_to_hbm [thread:$0]  %s143, 1024, %s145, [#allocation3], 128, 128, 8
    $region17: #{tpu_custom_call.1} parent=1 // pred_fallthru
      _
    // Predicated region
    $region18: #{tpu_custom_call.1} parent=1 // pred_check
      _
    $region19: #{tpu_custom_call.1} parent=1 // pred_check_branch
      %152 = sbr.rel (0) target = $region21
    $region20: #{tpu_custom_call.1} parent=1 // pred_region
      %154 = dma.done [#allocation3], 1024
    $region21: #{tpu_custom_call.1} parent=1 // pred_fallthru
      _
    %155 = vsyncpa [#allocation3], 1

</llo_original>
